<compile_context>
chip_gen: v5e
topology: v5e:2x2
jax: 0.10.0
libtpu: 0.0.40
codegen_flags: <defaults>
</compile_context>

<pallas_src>
import jax
import jax.numpy as jnp
from jax.experimental import pallas as pl
from jax.experimental.pallas import tpu as pltpu

_MIB = 1024 * 1024


def _round_up(x, m):
    return ((x + m - 1) // m) * m


def ffn_kernel(x_ref, w1_ref, b1_ref, w2_ref, b2_ref, o_ref, acc_ref):
    # One (batch-tile, hidden-tile) grid step.
    #   x_ref:  (bb, K)  input dtype (cast to MXU dtype in-kernel)
    #   w1_ref: (K, tH) bf16    b1_ref: (1, tH) f32
    #   w2_ref: (tH, N) bf16    b2_ref: (1, N)  f32
    #   o_ref:  (bb, N) f32     acc_ref: (bb, N) f32 scratch (lives across h)
    h_idx = pl.program_id(1)

    @pl.when(h_idx == 0)
    def _():
        acc_ref[...] = jnp.zeros_like(acc_ref)

    # In-kernel cast of x: free on the VPU underneath the MXU work.
    x = x_ref[...].astype(w1_ref.dtype)
    # fc1 slice on the MXU with f32 accumulation; bias + ReLU in f32
    # (keeps v5e on its native VPU path).
    h = jnp.dot(x, w1_ref[...], preferred_element_type=jnp.float32)
    h = jnp.maximum(h + b1_ref[...], 0.0)
    # dropout_1: identity (eval mode)
    acc_ref[...] += jnp.dot(h.astype(w2_ref.dtype), w2_ref[...],
                            preferred_element_type=jnp.float32)

    @pl.when(h_idx == pl.num_programs(1) - 1)
    def _():
        # dropout_2: identity (eval mode)
        o_ref[...] = (acc_ref[...] + b2_ref[...]).astype(o_ref.dtype)


def prepare_ffn_params(w1, b1, w2, b2, *, compute_dtype=jnp.bfloat16, lane=128):
    """One-time preprocessing (hoisted out of the per-call path).

    nn.Linear stores W as (out, in); transpose to (in, out), zero-pad every
    dim to a lane-dense multiple of `lane`, and cast MXU operands to
    compute_dtype.  Biases stay f32.  Zero padding is exact: padded rows of
    W1/W2 and padded bias entries are zero, so the math is unchanged.
    """
    hidden, feat_in = w1.shape
    n_class = w2.shape[0]
    K = _round_up(feat_in, lane)
    H = _round_up(hidden, lane)
    N = _round_up(n_class, lane)

    w1_t = jnp.zeros((K, H), compute_dtype).at[:feat_in, :hidden].set(
        w1.T.astype(compute_dtype))
    w2_t = jnp.zeros((H, N), compute_dtype).at[:hidden, :n_class].set(
        w2.T.astype(compute_dtype))
    b1_p = jnp.zeros((1, H), jnp.float32).at[:, :hidden].set(
        b1.astype(jnp.float32)[None, :])
    b2_p = jnp.zeros((1, N), jnp.float32).at[:, :n_class].set(
        b2.astype(jnp.float32)[None, :])
    return dict(w1=w1_t, b1=b1_p, w2=w2_t, b2=b2_p,
                feat_in=feat_in, hidden=hidden, n_class=n_class,
                compute_dtype=compute_dtype)


def ffn_forward(x, params, *, block_b=256):
    """x: (B, feat_in). params: output of prepare_ffn_params."""
    B, feat_in = x.shape
    assert feat_in == params["feat_in"]
    cdt = params["compute_dtype"]
    w1, b1, w2, b2 = params["w1"], params["b1"], params["w2"], params["b2"]
    K, H = w1.shape
    N = w2.shape[1]
    n_class = params["n_class"]
    itm = jnp.dtype(cdt).itemsize
    x_itm = jnp.dtype(x.dtype).itemsize

    # ---- batch tiling ----------------------------------------------------
    bb = min(block_b, _round_up(B, 8))
    # Keep >=2 batch steps when possible so the "parallel" axis can shard
    # across v7x's 2 TensorCores (harmless on v5e/v6e).
    if B > 8 and _round_up(B, 8) == bb:
        bb = max(8, _round_up(pl.cdiv(B, 2), 8))
    B_pad = _round_up(B, bb)
    n_b = B_pad // bb

    # ---- generation-aware VMEM budget -------------------------------------
    try:
        chip_vmem = pltpu.get_tpu_info().vmem_capacity_bytes
    except Exception:
        chip_vmem = 64 * _MIB          # conservative: v7x has the smallest VMEM
    vmem_cap = max(chip_vmem - 4 * _MIB, 16 * _MIB)

    def vmem_bytes(tH, w_bufs):
        act = 2 * bb * K * x_itm + 2 * bb * N * 4          # pipelined x / out tiles
        wts = w_bufs * ((K + N) * tH * itm + tH * 4) + N * 4
        inter = bb * tH * (4 + itm) + bb * K * itm          # fc1 f32 + bf16 copy + x cast
        return act + wts + inter + bb * N * 4               # + f32 accumulator scratch

    # Resident (single-buffered) weights when they fit comfortably, else
    # stream the hidden dim with double-buffered weight tiles.
    if int(vmem_bytes(H, 1) * 1.25) <= vmem_cap:
        tH, w_bufs = H, 1
    else:
        tH, w_bufs = 128, 2
        # TODO(synk): prefer tH as a multiple of 256 on v6e/v7x (256-deep MXU).
        for cand in range(H - 128, 127, -128):
            if H % cand == 0 and int(vmem_bytes(cand, 2) * 1.25) <= vmem_cap:
                tH = cand
                break
    n_h = H // tH
    vmem_limit = min(max(int(vmem_bytes(tH, w_bufs) * 1.25), 16 * _MIB), vmem_cap)

    # ---- input: avoid a materialized pad+cast copy when possible ----------
    if B_pad == B and K == feat_in:
        x_in = x                       # zero-copy; dtype cast happens in-kernel
    else:
        x_in = jnp.zeros((B_pad, K), x.dtype).at[:B, :feat_in].set(x)

    cost = pl.CostEstimate(
        flops=2 * B_pad * K * H + 2 * B_pad * H * N,
        transcendentals=0,
        bytes_accessed=(B_pad * K * x_itm + (K * H + H * N) * itm
                        + (H + N) * 4 + B_pad * N * 4),
    )

    def run(single_buffer_invariants):
        def const_spec(shape, index_map):
            if single_buffer_invariants:
                # Grid-invariant operand: double-buffering only doubles VMEM.
                return pl.BlockSpec(shape, index_map, pipeline_mode=pl.Buffered(1))
            return pl.BlockSpec(shape, index_map)

        # W1/b1/W2 are grid-invariant only when the hidden dim is not tiled.
        w_spec = const_spec if n_h == 1 else pl.BlockSpec

        return pl.pallas_call(
            ffn_kernel,
            out_shape=jax.ShapeDtypeStruct((B_pad, N), jnp.float32),
            grid_spec=pltpu.PrefetchScalarGridSpec(
                num_scalar_prefetch=0,
                grid=(n_b, n_h),
                in_specs=[
                    pl.BlockSpec((bb, K), lambda i, h: (i, 0)),   # x tile
                    w_spec((K, tH), lambda i, h: (0, h)),         # W1 tile
                    w_spec((1, tH), lambda i, h: (0, h)),         # b1 tile
                    w_spec((tH, N), lambda i, h: (h, 0)),         # W2 tile
                    const_spec((1, N), lambda i, h: (0, 0)),      # b2 (invariant)
                ],
                out_specs=pl.BlockSpec((bb, N), lambda i, h: (i, 0)),
                scratch_shapes=[pltpu.VMEM((bb, N), jnp.float32)],
            ),
            compiler_params=pltpu.CompilerParams(
                dimension_semantics=("parallel", "arbitrary"),
                vmem_limit_bytes=vmem_limit),
            cost_estimate=cost,
        )(x_in, w1, b1, w2, b2)

    try:
        out = run(True)
    except Exception:
        # Fallback if pipeline_mode=pl.Buffered(1) is unsupported by this jax.
        out = run(False)

    # Strip batch / class padding; return in the caller's dtype.
    return out[:B, :n_class].astype(x.dtype)


def init_ffn_params(key, feat_in, n_class, expansion=4, dtype=jnp.float32):
    """Deterministic init matching nn.Linear shapes (uniform +/- 1/sqrt(fan_in))."""
    hidden = feat_in * expansion
    k1, k2, k3, k4 = jax.random.split(key, 4)
    lim1 = 1.0 / (feat_in ** 0.5)
    lim2 = 1.0 / (hidden ** 0.5)
    w1 = jax.random.uniform(k1, (hidden, feat_in), dtype, -lim1, lim1)
    b1 = jax.random.uniform(k2, (hidden,), dtype, -lim1, lim1)
    w2 = jax.random.uniform(k3, (n_class, hidden), dtype, -lim2, lim2)
    b2 = jax.random.uniform(k4, (n_class,), dtype, -lim2, lim2)
    return w1, b1, w2, b2


if __name__ == "__main__":
    # Small shapes consistent with the module: feat_in=32, expansion=4 -> hidden=128.
    B, feat_in, n_class = 16, 32, 10
    key = jax.random.PRNGKey(0)
    kx, kp = jax.random.split(key)
    x = jax.random.normal(kx, (B, feat_in), jnp.float32)
    w1, b1, w2, b2 = init_ffn_params(kp, feat_in, n_class)

    # One-time weight preprocessing (transpose + pad + bf16 cast).
    params = prepare_ffn_params(w1, b1, w2, b2)

    out = ffn_forward(x, params)
    out = jax.block_until_ready(out)

    # Reference check in plain JAX (eval-mode FFN, f32). bf16 MXU operands
    # with f32 accumulation -> loose-ish tolerance.
    h_ref = jnp.maximum(x @ w1.T + b1, 0.0)
    ref = h_ref @ w2.T + b2
    assert out.shape == (B, n_class)
    assert jnp.allclose(out, ref, atol=3e-2, rtol=3e-2), (
        float(jnp.max(jnp.abs(out - ref))))

    print("KERNEL_OK")
</pallas_src>

<mosaic_0001>
module attributes {stable_mosaic.version = 11 : i64} {
  func.func @ffn_kernel(%arg0: i32, %arg1: i32, %arg2: memref<8x128xf32, #tpu.memory_space<vmem>>, %arg3: memref<128x128xbf16, #tpu.memory_space<vmem>>, %arg4: memref<1x128xf32, #tpu.memory_space<vmem>>, %arg5: memref<128x128xbf16, #tpu.memory_space<vmem>>, %arg6: memref<1x128xf32, #tpu.memory_space<vmem>>, %arg7: memref<8x128xf32, #tpu.memory_space<vmem>>, %arg8: memref<8x128xf32, #tpu.memory_space<vmem>>) attributes {dimension_semantics = [#tpu.dimension_semantics<parallel>, #tpu.dimension_semantics<arbitrary>], iteration_bounds = array<i64: 2, 1>, scalar_prefetch = 0 : i64, scratch_operands = 1 : i64, tpu.core_type = #tpu.core_type<tc>, window_params = [{transform_indices = @transform_0, window_bounds = array<i64: 8, 128>}, {pipeline_mode = #tpu.pipeline_mode<synchronous>, transform_indices = @transform_1, window_bounds = array<i64: 128, 128>}, {pipeline_mode = #tpu.pipeline_mode<synchronous>, transform_indices = @transform_2, window_bounds = array<i64: 1, 128>}, {pipeline_mode = #tpu.pipeline_mode<synchronous>, transform_indices = @transform_3, window_bounds = array<i64: 128, 128>}, {pipeline_mode = #tpu.pipeline_mode<synchronous>, transform_indices = @transform_4, window_bounds = array<i64: 1, 128>}, {transform_indices = @transform_5, window_bounds = array<i64: 8, 128>}]} {
    %c0_i32 = arith.constant 0 : i32
    %0 = arith.cmpi eq, %arg1, %c0_i32 : i32
    %1 = arith.extui %0 : i1 to i32
    %c0_i32_0 = arith.constant 0 : i32
    %2 = arith.cmpi ne, %1, %c0_i32_0 : i32
    scf.if %2 {
      %cst_16 = arith.constant 0.000000e+00 : f32
      %21 = vector.broadcast %cst_16 : f32 to vector<8x128xf32>
      %c0_17 = arith.constant 0 : index
      %c0_18 = arith.constant 0 : index
      %22 = vector.load %arg8[%c0_17, %c0_18] : memref<8x128xf32, #tpu.memory_space<vmem>>, vector<8x128xf32>
      tpu.vector_store %arg8[%c0_17, %c0_18], %21 {strides = array<i32>} : memref<8x128xf32, #tpu.memory_space<vmem>>, vector<8x128xf32>,
    } else {
    }
    %c0 = arith.constant 0 : index
    %c0_1 = arith.constant 0 : index
    %3 = vector.load %arg2[%c0, %c0_1] : memref<8x128xf32, #tpu.memory_space<vmem>>, vector<8x128xf32>
    %4 = arith.truncf %3 : vector<8x128xf32> to vector<8x128xbf16>
    %c0_2 = arith.constant 0 : index
    %c0_3 = arith.constant 0 : index
    %5 = vector.load %arg3[%c0_2, %c0_3] : memref<128x128xbf16, #tpu.memory_space<vmem>>, vector<128x128xbf16>
    %cst = arith.constant dense<0.000000e+00> : vector<8x128xf32>
    %6 = tpu.matmul %4, %5, %cst {dimension_numbers = #tpu.dot_dimension_numbers<[1], [0], [0], [1], [0, 0, 1, 1], [], []>} : vector<8x128xbf16>, vector<128x128xbf16>, vector<8x128xf32> -> vector<8x128xf32>
    %c0_4 = arith.constant 0 : index
    %c0_5 = arith.constant 0 : index
    %7 = vector.load %arg4[%c0_4, %c0_5] : memref<1x128xf32, #tpu.memory_space<vmem>>, vector<1x128xf32>
    %8 = vector.broadcast %7 : vector<1x128xf32> to vector<8x128xf32>
    %9 = arith.addf %6, %8 : vector<8x128xf32>
    %cst_6 = arith.constant 0.000000e+00 : f32
    %10 = vector.broadcast %cst_6 : f32 to vector<8x128xf32>
    %11 = arith.maximumf %9, %10 : vector<8x128xf32>
    %c0_7 = arith.constant 0 : index
    %c0_8 = arith.constant 0 : index
    %12 = vector.load %arg8[%c0_7, %c0_8] : memref<8x128xf32, #tpu.memory_space<vmem>>, vector<8x128xf32>
    %13 = arith.truncf %11 : vector<8x128xf32> to vector<8x128xbf16>
    %c0_9 = arith.constant 0 : index
    %c0_10 = arith.constant 0 : index
    %14 = vector.load %arg5[%c0_9, %c0_10] : memref<128x128xbf16, #tpu.memory_space<vmem>>, vector<128x128xbf16>
    %cst_11 = arith.constant dense<0.000000e+00> : vector<8x128xf32>
    %15 = tpu.matmul %13, %14, %cst_11 {dimension_numbers = #tpu.dot_dimension_numbers<[1], [0], [0], [1], [0, 0, 1, 1], [], []>} : vector<8x128xbf16>, vector<128x128xbf16>, vector<8x128xf32> -> vector<8x128xf32>
    %16 = arith.addf %12, %15 : vector<8x128xf32>
    %c0_12 = arith.constant 0 : index
    %c0_13 = arith.constant 0 : index
    %17 = vector.load %arg8[%c0_12, %c0_13] : memref<8x128xf32, #tpu.memory_space<vmem>>, vector<8x128xf32>
    tpu.vector_store %arg8[%c0_12, %c0_13], %16 {strides = array<i32>} : memref<8x128xf32, #tpu.memory_space<vmem>>, vector<8x128xf32>,
    %c0_i32_14 = arith.constant 0 : i32
    %18 = arith.cmpi eq, %arg1, %c0_i32_14 : i32
    %19 = arith.extui %18 : i1 to i32
    %c0_i32_15 = arith.constant 0 : i32
    %20 = arith.cmpi ne, %19, %c0_i32_15 : i32
    scf.if %20 {
      %c0_16 = arith.constant 0 : index
      %c0_17 = arith.constant 0 : index
      %21 = vector.load %arg8[%c0_16, %c0_17] : memref<8x128xf32, #tpu.memory_space<vmem>>, vector<8x128xf32>
      %c0_18 = arith.constant 0 : index
      %c0_19 = arith.constant 0 : index
      %22 = vector.load %arg6[%c0_18, %c0_19] : memref<1x128xf32, #tpu.memory_space<vmem>>, vector<1x128xf32>
      %23 = vector.broadcast %22 : vector<1x128xf32> to vector<8x128xf32>
      %24 = arith.addf %21, %23 : vector<8x128xf32>
      %c0_20 = arith.constant 0 : index
      %c0_21 = arith.constant 0 : index
      %25 = vector.load %arg7[%c0_20, %c0_21] : memref<8x128xf32, #tpu.memory_space<vmem>>, vector<8x128xf32>
      tpu.vector_store %arg7[%c0_20, %c0_21], %24 {strides = array<i32>} : memref<8x128xf32, #tpu.memory_space<vmem>>, vector<8x128xf32>,
    } else {
    }
    return
  }
  func.func @transform_0(%arg0: i32, %arg1: i32) -> (i32, i32) {
    %c0_i32 = arith.constant 0 : i32
    %c0_i32_0 = arith.constant 0 : i32
    return %arg0, %c0_i32 : i32, i32
  }
  func.func @transform_1(%arg0: i32, %arg1: i32) -> (i32, i32) {
    %c0_i32 = arith.constant 0 : i32
    %c0_i32_0 = arith.constant 0 : i32
    return %c0_i32, %arg1 : i32, i32
  }
  func.func @transform_2(%arg0: i32, %arg1: i32) -> (i32, i32) {
    %c0_i32 = arith.constant 0 : i32
    %c0_i32_0 = arith.constant 0 : i32
    return %c0_i32, %arg1 : i32, i32
  }
  func.func @transform_3(%arg0: i32, %arg1: i32) -> (i32, i32) {
    %c0_i32 = arith.constant 0 : i32
    %c0_i32_0 = arith.constant 0 : i32
    return %arg1, %c0_i32 : i32, i32
  }
  func.func @transform_4(%arg0: i32, %arg1: i32) -> (i32, i32) {
    %c0_i32 = arith.constant 0 : i32
    %c0_i32_0 = arith.constant 0 : i32
    %c0_i32_1 = arith.constant 0 : i32
    return %c0_i32, %c0_i32_0 : i32, i32
  }
  func.func @transform_5(%arg0: i32, %arg1: i32) -> (i32, i32) {
    %c0_i32 = arith.constant 0 : i32
    %c0_i32_0 = arith.constant 0 : i32
    return %arg0, %c0_i32 : i32, i32
  }
}

module attributes {stable_mosaic.version = 11 : i64} {
  func.func @ffn_kernel(%arg0: i32, %arg1: i32, %arg2: memref<8x128xf32, #tpu.memory_space<vmem>>, %arg3: memref<128x128xbf16, #tpu.memory_space<vmem>>, %arg4: memref<1x128xf32, #tpu.memory_space<vmem>>, %arg5: memref<128x128xbf16, #tpu.memory_space<vmem>>, %arg6: memref<1x128xf32, #tpu.memory_space<vmem>>, %arg7: memref<8x128xf32, #tpu.memory_space<vmem>>, %arg8: memref<8x128xf32, #tpu.memory_space<vmem>>) attributes {dimension_semantics = [#tpu.dimension_semantics<parallel>, #tpu.dimension_semantics<arbitrary>], iteration_bounds = array<i64: 2, 1>, scalar_prefetch = 0 : i64, scratch_operands = 1 : i64, tpu.core_type = #tpu.core_type<tc>, window_params = [{transform_indices = @transform_0, window_bounds = array<i64: 8, 128>}, {transform_indices = @transform_1, window_bounds = array<i64: 128, 128>}, {transform_indices = @transform_2, window_bounds = array<i64: 1, 128>}, {transform_indices = @transform_3, window_bounds = array<i64: 128, 128>}, {pipeline_mode = #tpu.pipeline_mode<synchronous>, transform_indices = @transform_4, window_bounds = array<i64: 1, 128>}, {transform_indices = @transform_5, window_bounds = array<i64: 8, 128>}]} {
    %c0_i32 = arith.constant 0 : i32
    %0 = arith.cmpi eq, %arg1, %c0_i32 : i32
    %1 = arith.extui %0 : i1 to i32
    %c0_i32_0 = arith.constant 0 : i32
    %2 = arith.cmpi ne, %1, %c0_i32_0 : i32
    scf.if %2 {
      %cst_16 = arith.constant 0.000000e+00 : f32
      %21 = vector.broadcast %cst_16 : f32 to vector<8x128xf32>
      %c0_17 = arith.constant 0 : index
      %c0_18 = arith.constant 0 : index
      %22 = vector.load %arg8[%c0_17, %c0_18] : memref<8x128xf32, #tpu.memory_space<vmem>>, vector<8x128xf32>
      tpu.vector_store %arg8[%c0_17, %c0_18], %21 {strides = array<i32>} : memref<8x128xf32, #tpu.memory_space<vmem>>, vector<8x128xf32>,
    } else {
    }
    %c0 = arith.constant 0 : index
    %c0_1 = arith.constant 0 : index
    %3 = vector.load %arg2[%c0, %c0_1] : memref<8x128xf32, #tpu.memory_space<vmem>>, vector<8x128xf32>
    %4 = arith.truncf %3 : vector<8x128xf32> to vector<8x128xbf16>
    %c0_2 = arith.constant 0 : index
    %c0_3 = arith.constant 0 : index
    %5 = vector.load %arg3[%c0_2, %c0_3] : memref<128x128xbf16, #tpu.memory_space<vmem>>, vector<128x128xbf16>
    %cst = arith.constant dense<0.000000e+00> : vector<8x128xf32>
    %6 = tpu.matmul %4, %5, %cst {dimension_numbers = #tpu.dot_dimension_numbers<[1], [0], [0], [1], [0, 0, 1, 1], [], []>} : vector<8x128xbf16>, vector<128x128xbf16>, vector<8x128xf32> -> vector<8x128xf32>
    %c0_4 = arith.constant 0 : index
    %c0_5 = arith.constant 0 : index
    %7 = vector.load %arg4[%c0_4, %c0_5] : memref<1x128xf32, #tpu.memory_space<vmem>>, vector<1x128xf32>
    %8 = vector.broadcast %7 : vector<1x128xf32> to vector<8x128xf32>
    %9 = arith.addf %6, %8 : vector<8x128xf32>
    %cst_6 = arith.constant 0.000000e+00 : f32
    %10 = vector.broadcast %cst_6 : f32 to vector<8x128xf32>
    %11 = arith.maximumf %9, %10 : vector<8x128xf32>
    %c0_7 = arith.constant 0 : index
    %c0_8 = arith.constant 0 : index
    %12 = vector.load %arg8[%c0_7, %c0_8] : memref<8x128xf32, #tpu.memory_space<vmem>>, vector<8x128xf32>
    %13 = arith.truncf %11 : vector<8x128xf32> to vector<8x128xbf16>
    %c0_9 = arith.constant 0 : index
    %c0_10 = arith.constant 0 : index
    %14 = vector.load %arg5[%c0_9, %c0_10] : memref<128x128xbf16, #tpu.memory_space<vmem>>, vector<128x128xbf16>
    %cst_11 = arith.constant dense<0.000000e+00> : vector<8x128xf32>
    %15 = tpu.matmul %13, %14, %cst_11 {dimension_numbers = #tpu.dot_dimension_numbers<[1], [0], [0], [1], [0, 0, 1, 1], [], []>} : vector<8x128xbf16>, vector<128x128xbf16>, vector<8x128xf32> -> vector<8x128xf32>
    %16 = arith.addf %12, %15 : vector<8x128xf32>
    %c0_12 = arith.constant 0 : index
    %c0_13 = arith.constant 0 : index
    %17 = vector.load %arg8[%c0_12, %c0_13] : memref<8x128xf32, #tpu.memory_space<vmem>>, vector<8x128xf32>
    tpu.vector_store %arg8[%c0_12, %c0_13], %16 {strides = array<i32>} : memref<8x128xf32, #tpu.memory_space<vmem>>, vector<8x128xf32>,
    %c0_i32_14 = arith.constant 0 : i32
    %18 = arith.cmpi eq, %arg1, %c0_i32_14 : i32
    %19 = arith.extui %18 : i1 to i32
    %c0_i32_15 = arith.constant 0 : i32
    %20 = arith.cmpi ne, %19, %c0_i32_15 : i32
    scf.if %20 {
      %c0_16 = arith.constant 0 : index
      %c0_17 = arith.constant 0 : index
      %21 = vector.load %arg8[%c0_16, %c0_17] : memref<8x128xf32, #tpu.memory_space<vmem>>, vector<8x128xf32>
      %c0_18 = arith.constant 0 : index
      %c0_19 = arith.constant 0 : index
      %22 = vector.load %arg6[%c0_18, %c0_19] : memref<1x128xf32, #tpu.memory_space<vmem>>, vector<1x128xf32>
      %23 = vector.broadcast %22 : vector<1x128xf32> to vector<8x128xf32>
      %24 = arith.addf %21, %23 : vector<8x128xf32>
      %c0_20 = arith.constant 0 : index
      %c0_21 = arith.constant 0 : index
      %25 = vector.load %arg7[%c0_20, %c0_21] : memref<8x128xf32, #tpu.memory_space<vmem>>, vector<8x128xf32>
      tpu.vector_store %arg7[%c0_20, %c0_21], %24 {strides = array<i32>} : memref<8x128xf32, #tpu.memory_space<vmem>>, vector<8x128xf32>,
    } else {
    }
    return
  }
  func.func @transform_0(%arg0: i32, %arg1: i32) -> (i32, i32) {
    %c0_i32 = arith.constant 0 : i32
    %c0_i32_0 = arith.constant 0 : i32
    return %arg0, %c0_i32 : i32, i32
  }
  func.func @transform_1(%arg0: i32, %arg1: i32) -> (i32, i32) {
    %c0_i32 = arith.constant 0 : i32
    %c0_i32_0 = arith.constant 0 : i32
    return %c0_i32, %arg1 : i32, i32
  }
  func.func @transform_2(%arg0: i32, %arg1: i32) -> (i32, i32) {
    %c0_i32 = arith.constant 0 : i32
    %c0_i32_0 = arith.constant 0 : i32
    return %c0_i32, %arg1 : i32, i32
  }
  func.func @transform_3(%arg0: i32, %arg1: i32) -> (i32, i32) {
    %c0_i32 = arith.constant 0 : i32
    %c0_i32_0 = arith.constant 0 : i32
    return %arg1, %c0_i32 : i32, i32
  }
  func.func @transform_4(%arg0: i32, %arg1: i32) -> (i32, i32) {
    %c0_i32 = arith.constant 0 : i32
    %c0_i32_0 = arith.constant 0 : i32
    %c0_i32_1 = arith.constant 0 : i32
    return %c0_i32, %c0_i32_0 : i32, i32
  }
  func.func @transform_5(%arg0: i32, %arg1: i32) -> (i32, i32) {
    %c0_i32 = arith.constant 0 : i32
    %c0_i32_0 = arith.constant 0 : i32
    return %arg0, %c0_i32 : i32, i32
  }
}

</mosaic_0001>

<llo_original>
// kernel: tpu_custom_call.1
$region0: #{tpu_custom_call.1}
  #allocation0 [shape = 'u32[]', space=smem, size = 0x4, offset = 0x4, fixed_abs, tag = 'smem constant byte address 0x4 - core index']
  #allocation1 [shape = 'u32[72,128]{1,0:T(1,128)}', space=vmem, size = 0x9000, scoped, tag = 'internal scratch']
  #allocation2 [shape = 'f32[8,128]{1,0:T(8,128)}', space=vmem, size = 0x1000, scoped, tag = 'scratch operand']
  %s0 = inlined_call_operand.hbm [shape: f32[16,128], index: 0, kind: input, shape index: {}]
  %s1 = inlined_call_operand.hbm [shape: bf16[128,128], index: 1, kind: input, shape index: {}]
  %s2 = inlined_call_operand.vmem [shape: f32[1,128], index: 2, kind: input, shape index: {}]
  %s3 = inlined_call_operand.hbm [shape: bf16[128,128], index: 3, kind: input, shape index: {}]
  %s4 = inlined_call_operand.vmem [shape: f32[1,128], index: 4, kind: input, shape index: {}]
  %s5 = inlined_call_operand.hbm [shape: f32[16,128], index: 5, kind: output, shape index: {}]
  %s6 = sld [smem:[#allocation0]]
  $region73: #{tpu_custom_call.1} parent=0
    _
  %s8 = ssub.s32 1, %s6
  %s9 = scalar_select 0, %s8, %s6
  $region1: #{tpu_custom_call.1} parent=0
    #allocation3 [shape = 'u8[8192]{0}', space=vmem, size = 0x2000, scoped, tag = 'input window, operand 0']
    #allocation4 [shape = 's32[2]{0}', space=sflag, size = 0x8, scoped, tag = 'scoped memory for tpu_custom_call.1']
    #allocation5 [shape = 's32[2]{0}', space=sflag, size = 0x8, scoped, tag = 'scoped memory for tpu_custom_call.1']
    #allocation6 [shape = 'u8[32768]{0}', space=vmem, size = 0x8000, scoped, tag = 'input window, operand 1, single buffered']
    #allocation7 [shape = 's32[1]{0}', space=sflag, size = 0x4, scoped, tag = 'scoped memory for tpu_custom_call.1']
    #allocation8 [shape = 'u8[32768]{0}', space=vmem, size = 0x8000, scoped, tag = 'input window, operand 3, single buffered']
    #allocation9 [shape = 'u8[8192]{0}', space=vmem, size = 0x2000, scoped, tag = 'output window, operand 0']
    %10 = vsyncpa [#allocation4], 0
    %s11 = scalar_lea.sflag [#allocation4], 1
    %12 = vsyncpa %s11, 0
    %13 = vsyncpa [#allocation7], 0
    %14 = vsyncpa [#allocation5], 0
    %s15 = scalar_lea.sflag [#allocation5], 1
    %16 = vsyncpa %s15, 0
    loop: start=0, step=1, limit=4
    $region2: #{tpu_custom_call.1} parent=1 // loop_pre_header
      _
    $region3: #{tpu_custom_call.1} parent=1 // loop_header
      %s18 = sphi 0, %s22
      %p19 = scmp.ge.s32.totalorder %s18, 4
      %s25 = sphi 0, %s37
      %s26 = sphi 0, %s33
      %s27 = sphi 0, %s25
      %s28 = sphi 0, %s26
      %s29 = sphi 0, %s27
      %s30 = sphi 0, %s28
      %s40 = sphi 0, %s42
      %s43 = sphi 0, %s40
      %s44 = sphi 0, %s43
      %s60 = sphi 0, %s44
      %s66 = sphi 0, %s68
      %s69 = sphi 0, %s66
      %s70 = sphi 0, %s69
      %s86 = sphi 0, %s70
      %s92 = sphi 0, %s94
      %s95 = sphi 0, %s92
      %s96 = sphi 0, %s95
      %s112 = sphi 0, %s96
      %s118 = sphi 0, %s120
      %s121 = sphi 0, %s118
      %s122 = sphi 0, %s121
      %s138 = sphi 0, %s122
      %s142 = sphi 0, %s142
      %s144 = sphi 0, %s142
      %s145 = sphi 0, %s144
      %s159 = sphi 0, %s145
      %s165 = sphi 0, %s167
      %s168 = sphi 0, %s165
      %s169 = sphi 0, %s168
      %s185 = sphi 0, %s169
    $region4: #{tpu_custom_call.1} parent=1 // loop_header_branch
      %21 = sbr.rel (%p19) target = $region8
    $region5: #{tpu_custom_call.1} parent=1 // loop_body
      %s23 = ssub.s32 %s18, 1
      %s24 = ssub.s32 %s18, 2
      %s31 = sadd.s32 1, %s26
      %p32 = scmp.ge.s32.totalorder %s31, 1
      %s33 = scalar_select %p32, 0, %s31
      %s34 = sadd.s32 1, %s25
      %s35 = scalar_select %p32, %s34, %s25
      %p36 = scmp.ge.s32.totalorder %s35, 2
      %s37 = scalar_select %p36, 0, %s35
      %s38 = ssub.s32 %s25, %s37
      %p39 = scmp.eq.s32.totalorder %s38, 0
      %s41 = sadd.s32 %s40, 1
      %s42 = scalar_select %p39, %s40, %s41
      %p45 = pneg %p39
      %p46 = scmp.eq.s32.totalorder %s18, 1
      %p47 = por %p45, %p46
      %p48 = scmp.ne.s32.totalorder %s40, %s43
      %p49 = scmp.eq.s32.totalorder %s18, 0
      %p50 = por %p48, %p49
      %p51 = scmp.ne.s32.totalorder %s40, %s43
      %p52 = scmp.eq.s32.totalorder %s23, 1
      %p53 = por %p51, %p52
      %p54 = scmp.ne.s32.totalorder %s43, %s44
      %p55 = scmp.eq.s32.totalorder %s23, 0
      %p56 = por %p54, %p55
      %p57 = scmp.ne.s32.totalorder %s43, %s44
      %p58 = scmp.eq.s32.totalorder %s24, 1
      %p59 = por %p57, %p58
      %p61 = scmp.ne.s32.totalorder %s44, %s60
      %p62 = scmp.eq.s32.totalorder %s24, 0
      %p63 = por %p61, %p62
      %s64 = ssub.s32 %s26, %s33
      %p65 = scmp.eq.s32.totalorder %s64, 0
      %s67 = sadd.s32 %s66, 1
      %s68 = scalar_select %p65, %s66, %s67
      %p71 = pneg %p65
      %p72 = scmp.eq.s32.totalorder %s18, 1
      %p73 = por %p71, %p72
      %p74 = scmp.ne.s32.totalorder %s66, %s69
      %p75 = scmp.eq.s32.totalorder %s18, 0
      %p76 = por %p74, %p75
      %p77 = scmp.ne.s32.totalorder %s66, %s69
      %p78 = scmp.eq.s32.totalorder %s23, 1
      %p79 = por %p77, %p78
      %p80 = scmp.ne.s32.totalorder %s69, %s70
      %p81 = scmp.eq.s32.totalorder %s23, 0
      %p82 = por %p80, %p81
      %p83 = scmp.ne.s32.totalorder %s69, %s70
      %p84 = scmp.eq.s32.totalorder %s24, 1
      %p85 = por %p83, %p84
      %p87 = scmp.ne.s32.totalorder %s70, %s86
      %p88 = scmp.eq.s32.totalorder %s24, 0
      %p89 = por %p87, %p88
      %s90 = ssub.s32 %s26, %s33
      %p91 = scmp.eq.s32.totalorder %s90, 0
      %s93 = sadd.s32 %s92, 1
      %s94 = scalar_select %p91, %s92, %s93
      %p97 = pneg %p91
      %p98 = scmp.eq.s32.totalorder %s18, 1
      %p99 = por %p97, %p98
      %p100 = scmp.ne.s32.totalorder %s92, %s95
      %p101 = scmp.eq.s32.totalorder %s18, 0
      %p102 = por %p100, %p101
      %p103 = scmp.ne.s32.totalorder %s92, %s95
      %p104 = scmp.eq.s32.totalorder %s23, 1
      %p105 = por %p103, %p104
      %p106 = scmp.ne.s32.totalorder %s95, %s96
      %p107 = scmp.eq.s32.totalorder %s23, 0
      %p108 = por %p106, %p107
      %p109 = scmp.ne.s32.totalorder %s95, %s96
      %p110 = scmp.eq.s32.totalorder %s24, 1
      %p111 = por %p109, %p110
      %p113 = scmp.ne.s32.totalorder %s96, %s112
      %p114 = scmp.eq.s32.totalorder %s24, 0
      %p115 = por %p113, %p114
      %s116 = ssub.s32 %s26, %s33
      %p117 = scmp.eq.s32.totalorder %s116, 0
      %s119 = sadd.s32 %s118, 1
      %s120 = scalar_select %p117, %s118, %s119
      %p123 = pneg %p117
      %p124 = scmp.eq.s32.totalorder %s18, 1
      %p125 = por %p123, %p124
      %p126 = scmp.ne.s32.totalorder %s118, %s121
      %p127 = scmp.eq.s32.totalorder %s18, 0
      %p128 = por %p126, %p127
      %p129 = scmp.ne.s32.totalorder %s118, %s121
      %p130 = scmp.eq.s32.totalorder %s23, 1
      %p131 = por %p129, %p130
      %p132 = scmp.ne.s32.totalorder %s121, %s122
      %p133 = scmp.eq.s32.totalorder %s23, 0
      %p134 = por %p132, %p133
      %p135 = scmp.ne.s32.totalorder %s121, %s122
      %p136 = scmp.eq.s32.totalorder %s24, 1
      %p137 = por %p135, %p136
      %p139 = scmp.ne.s32.totalorder %s122, %s138
      %p140 = scmp.eq.s32.totalorder %s24, 0
      %p141 = por %p139, %p140
      %s143 = sadd.s32 %s142, 1
      %p146 = scmp.eq.s32.totalorder %s18, 1
      %p147 = scmp.ne.s32.totalorder %s142, %s144
      %p148 = scmp.eq.s32.totalorder %s18, 0
      %p149 = por %p147, %p148
      %p150 = scmp.ne.s32.totalorder %s142, %s144
      %p151 = scmp.eq.s32.totalorder %s23, 1
      %p152 = por %p150, %p151
      %p153 = scmp.ne.s32.totalorder %s144, %s145
      %p154 = scmp.eq.s32.totalorder %s23, 0
      %p155 = por %p153, %p154
      %p156 = scmp.ne.s32.totalorder %s144, %s145
      %p157 = scmp.eq.s32.totalorder %s24, 1
      %p158 = por %p156, %p157
      %p160 = scmp.ne.s32.totalorder %s145, %s159
      %p161 = scmp.eq.s32.totalorder %s24, 0
      %p162 = por %p160, %p161
      %s163 = ssub.s32 %s25, %s37
      %p164 = scmp.eq.s32.totalorder %s163, 0
      %s166 = sadd.s32 %s165, 1
      %s167 = scalar_select %p164, %s165, %s166
      %p170 = pneg %p164
      %p171 = scmp.eq.s32.totalorder %s18, 1
      %p172 = por %p170, %p171
      %p173 = scmp.ne.s32.totalorder %s165, %s168
      %p174 = scmp.eq.s32.totalorder %s18, 0
      %p175 = por %p173, %p174
      %p176 = scmp.ne.s32.totalorder %s165, %s168
      %p177 = scmp.eq.s32.totalorder %s23, 1
      %p178 = por %p176, %p177
      %p179 = scmp.ne.s32.totalorder %s168, %s169
      %p180 = scmp.eq.s32.totalorder %s23, 0
      %p181 = por %p179, %p180
      %p182 = scmp.ne.s32.totalorder %s168, %s169
      %p183 = scmp.eq.s32.totalorder %s24, 1
      %p184 = por %p182, %p183
      %p186 = scmp.ne.s32.totalorder %s169, %s185
      %p187 = scmp.eq.s32.totalorder %s24, 0
      %p188 = por %p186, %p187
      %p189 = scmp.le.s32.totalorder 1, %s18
      %p190 = scmp.lt.s32.totalorder %s18, 3
      %p191 = pnand %p189, %p190
      %p192 = pneg %p191
      // Predicated region
      $region9: #{tpu_custom_call.1} parent=5 // pred_check
        _
      $region10: #{tpu_custom_call.1} parent=5 // pred_check_branch
        %194 = sbr.rel (%p191) target = $region12
      $region11: #{tpu_custom_call.1} parent=5 // pred_region
        %s195 = ssub.s32 %s18, 1
        // Predicated region
        $region13: #{tpu_custom_call.1} parent=11 // pred_check
          %p196 = pneg %p82
        $region14: #{tpu_custom_call.1} parent=11 // pred_check_branch
          %198 = sbr.rel (%p196) target = $region16
        $region15: #{tpu_custom_call.1} parent=11 // pred_region
          %200 = vsyncadd [#allocation7], 0
          %s201 = smul.addr %s28, 4
          %s202 = scalar_lea.hbm %s1, %s201
          %s203 = sshll.u32 %s202, 4
          %s204 = int_to_ptr.hbm [resolvable:$true] %s203
          %s205 = sshll.u32 [#allocation6], 4
          %s206 = int_to_ptr.vmem [resolvable:$true] %s205
          %211 = dma.hbm_to_vmem [thread:$0]  %s204, 1024, %s206, [#allocation7], 64, 64, 4
        $region16: #{tpu_custom_call.1} parent=11 // pred_fallthru
          _
        // Predicated region
        $region17: #{tpu_custom_call.1} parent=11 // pred_check
          %p212 = pneg %p108
        $region18: #{tpu_custom_call.1} parent=11 // pred_check_branch
          %214 = sbr.rel (%p212) target = $region20
        $region19: #{tpu_custom_call.1} parent=11 // pred_region
          %p215 = scmp.lt.s32.totalorder %s28, 0
          %s216 = scalar_select %p215, %s28, 0
          %s217 = scalar_lea.vmem %s2, %s216
        $region20: #{tpu_custom_call.1} parent=11 // pred_fallthru
          _
        // Predicated region
        $region21: #{tpu_custom_call.1} parent=11 // pred_check
          %p218 = pneg %p134
        $region22: #{tpu_custom_call.1} parent=11 // pred_check_branch
          %220 = sbr.rel (%p218) target = $region24
        $region23: #{tpu_custom_call.1} parent=11 // pred_region
          %s221 = smul.u32 16, %s28
          %223 = vsyncadd [#allocation7], 0
          %s224 = smul.addr %s221, 4
          %s225 = scalar_lea.hbm %s3, %s224
          %s226 = sshll.u32 %s225, 4
          %s227 = int_to_ptr.hbm [resolvable:$true] %s226
          %s228 = sshll.u32 [#allocation8], 4
          %s229 = int_to_ptr.vmem [resolvable:$true] %s228
          %234 = dma.hbm_to_vmem [thread:$0]  %s227, 1024, %s229, [#allocation7], 64, 64, 4
        $region24: #{tpu_custom_call.1} parent=11 // pred_fallthru
          _
        // Predicated region
        $region25: #{tpu_custom_call.1} parent=11 // pred_check
          %p235 = pneg %p155
        $region26: #{tpu_custom_call.1} parent=11 // pred_check_branch
          %237 = sbr.rel (%p235) target = $region28
        $region27: #{tpu_custom_call.1} parent=11 // pred_region
          _
        $region28: #{tpu_custom_call.1} parent=11 // pred_fallthru
          _
      $region12: #{tpu_custom_call.1} parent=5 // pred_fallthru
        _
      %p238 = scmp.lt.s32.totalorder %s18, 2
      // Predicated region
      $region29: #{tpu_custom_call.1} parent=5 // pred_check
        %p239 = pneg %p238
      $region30: #{tpu_custom_call.1} parent=5 // pred_check_branch
        %241 = sbr.rel (%p239) target = $region32
      $region31: #{tpu_custom_call.1} parent=5 // pred_region
        // Predicated region
        $region33: #{tpu_custom_call.1} parent=31 // pred_check
          %p242 = pneg %p50
        $region34: #{tpu_custom_call.1} parent=31 // pred_check_branch
          %244 = sbr.rel (%p242) target = $region36
        $region35: #{tpu_custom_call.1} parent=31 // pred_region
          %s245 = sand.u32 %s40, 1
          %s246 = scalar_lea.sflag [#allocation4], %s245
          %s247 = sand.u32 %s40, 1
          %s248 = smul.addr %s247, 8
          %s249 = scalar_lea.vmem [#allocation3], %s248
          %251 = vsyncadd %s246, 0
          %s252 = smul.addr %s25, 8
          %s253 = scalar_lea.hbm %s0, %s252
          %s255 = sshll.u32 %s253, 4
          %s256 = int_to_ptr.hbm [resolvable:$true] %s255
          %s257 = sshll.u32 %s249, 4
          %s258 = int_to_ptr.vmem [resolvable:$true] %s257
          %260 = dma.hbm_to_vmem [thread:$0]  %s256, 128, %s258, %s246
        $region36: #{tpu_custom_call.1} parent=31 // pred_fallthru
          _
      $region32: #{tpu_custom_call.1} parent=5 // pred_fallthru
        _
      %p261 = scmp.le.s32.totalorder 1, %s18
      %p262 = scmp.lt.s32.totalorder %s18, 3
      %p263 = pnand %p261, %p262
      %p264 = pneg %p263
      // Predicated region
      $region37: #{tpu_custom_call.1} parent=5 // pred_check
        _
      $region38: #{tpu_custom_call.1} parent=5 // pred_check_branch
        %266 = sbr.rel (%p263) target = $region40
      $region39: #{tpu_custom_call.1} parent=5 // pred_region
        %s267 = ssub.s32 %s18, 1
        %s268 = sand.u32 %s43, 1
        %s269 = scalar_lea.sflag [#allocation4], %s268
        %s270 = sand.u32 %s43, 1
        %s271 = smul.addr %s270, 8
        %s272 = scalar_lea.vmem [#allocation3], %s271
        // Predicated region
        $region41: #{tpu_custom_call.1} parent=39 // pred_check
          %p273 = pneg %p56
        $region42: #{tpu_custom_call.1} parent=39 // pred_check_branch
          %275 = sbr.rel (%p273) target = $region44
        $region43: #{tpu_custom_call.1} parent=39 // pred_region
          %277 = dma.done %s269, 128
        $region44: #{tpu_custom_call.1} parent=39 // pred_fallthru
          _
        // Predicated region
        $region45: #{tpu_custom_call.1} parent=39 // pred_check
          %p278 = pneg %p82
        $region46: #{tpu_custom_call.1} parent=39 // pred_check_branch
          %280 = sbr.rel (%p278) target = $region48
        $region47: #{tpu_custom_call.1} parent=39 // pred_region
          %282 = dma.done [#allocation7], 1024
        $region48: #{tpu_custom_call.1} parent=39 // pred_fallthru
          _
        // Predicated region
        $region49: #{tpu_custom_call.1} parent=39 // pred_check
          %p283 = pneg %p134
        $region50: #{tpu_custom_call.1} parent=39 // pred_check_branch
          %285 = sbr.rel (%p283) target = $region52
        $region51: #{tpu_custom_call.1} parent=39 // pred_region
          %287 = dma.done [#allocation7], 1024
        $region52: #{tpu_custom_call.1} parent=39 // pred_fallthru
          _
        %s288 = sand.u32 %s43, 1
        %s289 = scalar_lea.sflag [#allocation4], %s288
        %s290 = sand.u32 %s43, 1
        %s291 = smul.addr %s290, 8
        %s292 = scalar_lea.vmem [#allocation3], %s291
        %p293 = pneg %p56
        %p294 = pneg %p53
        %p295 = pneg %p82
        %p296 = pneg %p79
        %p297 = scmp.lt.s32.totalorder %s28, 0
        %s298 = scalar_select %p297, %s28, 0
        %s299 = scalar_lea.vmem %s2, %s298
        %p300 = pneg %p108
        %p301 = pneg %p105
        %p302 = pneg %p134
        %p303 = pneg %p131
        %p304 = pneg %p155
        %p305 = pneg %p152
        %p306 = pneg %p181
        %p307 = pneg %p178
        %s308 = sand.u32 %s168, 1
        %s309 = scalar_lea.sflag [#allocation5], %s308
        %s310 = sand.u32 %s168, 1
        %s311 = smul.addr %s310, 8
        %s312 = scalar_lea.vmem [#allocation9], %s311
        %p313 = scmp.lt.s32.totalorder %s28, 0
        %s314 = scalar_select %p313, %s28, 0
        %s315 = scalar_lea.vmem %s2, %s314
        %s316 = smul.u32 16, %s28
        %p317 = scmp.eq.s32.totalorder %s28, 0
        // Predicated region
        $region53: #{tpu_custom_call.1} parent=39 // pred_check
          %p318 = pneg %p317
        $region54: #{tpu_custom_call.1} parent=39 // pred_check_branch
          %320 = sbr.rel (%p318) target = $region56
        $region55: #{tpu_custom_call.1} parent=39 // pred_region
          %321 = vst [vmem:[#allocation2] sm:$0xff] 0.0
        $region56: #{tpu_custom_call.1} parent=39 // pred_fallthru
          _
        %v322 = vld [vmem:[%s272] sm:$0xff]
        %v323 = vpack.c.bf16 %v322, %v322
        %v324 = vld [vmem:[#allocation6] sm:$0xf]
        %v325 = vld [vmem:[#allocation6 + $0x4] sm:$0xf]
        %v326 = vld [vmem:[#allocation6 + $0x8] sm:$0xf]
        %v327 = vld [vmem:[#allocation6 + $0xc] sm:$0xf]
        %v328 = vld [vmem:[#allocation6 + $0x10] sm:$0xf]
        %v329 = vld [vmem:[#allocation6 + $0x14] sm:$0xf]
        %v330 = vld [vmem:[#allocation6 + $0x18] sm:$0xf]
        %v331 = vld [vmem:[#allocation6 + $0x1c] sm:$0xf]
        %v332 = vld [vmem:[#allocation6 + $0x20] sm:$0xf]
        %v333 = vld [vmem:[#allocation6 + $0x24] sm:$0xf]
        %v334 = vld [vmem:[#allocation6 + $0x28] sm:$0xf]
        %v335 = vld [vmem:[#allocation6 + $0x2c] sm:$0xf]
        %v336 = vld [vmem:[#allocation6 + $0x30] sm:$0xf]
        %v337 = vld [vmem:[#allocation6 + $0x34] sm:$0xf]
        %v338 = vld [vmem:[#allocation6 + $0x38] sm:$0xf]
        %v339 = vld [vmem:[#allocation6 + $0x3c] sm:$0xf]
        %v340 = vld [vmem:[%s315] sm:$0x1]
        %v342 = vperm.slane %v340, 0
        %v360 = vunpack.c.l.b16 %v324
        %v361 = vunpack.c.l.b16 %v325
        %v362 = vunpack.c.l.b16 %v326
        %v363 = vunpack.c.l.b16 %v327
        %v364 = vunpack.c.l.b16 %v328
        %v365 = vunpack.c.l.b16 %v329
        %v366 = vunpack.c.l.b16 %v330
        %v367 = vunpack.c.l.b16 %v331
        %v368 = vunpack.c.l.b16 %v332
        %v369 = vunpack.c.l.b16 %v333
        %v370 = vunpack.c.l.b16 %v334
        %v371 = vunpack.c.l.b16 %v335
        %v372 = vunpack.c.l.b16 %v336
        %v373 = vunpack.c.l.b16 %v337
        %v374 = vunpack.c.l.b16 %v338
        %v375 = vunpack.c.l.b16 %v339
        %v376 = vpack.c.b16 %v361, %v360
        %v377 = vpack.c.b16 %v363, %v362
        %v378 = vpack.c.b16 %v365, %v364
        %v379 = vpack.c.b16 %v367, %v366
        %v380 = vpack.c.b16 %v369, %v368
        %v381 = vpack.c.b16 %v371, %v370
        %v382 = vpack.c.b16 %v373, %v372
        %v383 = vpack.c.b16 %v375, %v374
        %392 = vmatpush.bf16.msra.mxu0 %v383
        %393 = vmatpush.bf16.msra.mxu0 %v382
        %394 = vmatpush.bf16.msra.mxu0 %v381
        %395 = vmatpush.bf16.msra.mxu0 %v380
        %396 = vmatpush.bf16.msra.mxu0 %v379
        %397 = vmatpush.bf16.msra.mxu0 %v378
        %398 = vmatpush.bf16.msra.mxu0 %v377
        %399 = vmatpush.bf16.msra.mxu0 %v376
        %400 = vmatmul.bf16.gmra.mxu0 %v323
        %v401 = vpop.f32.mrf.mxu0
        %v402 = vadd.f32 %v342, %v401
        %v403 = vpop.f32.mrf.mxu0
        %404 = vdwg.mxu0
        %v405 = vmax.f32 %v402, 0.0
        %v406 = vld [vmem:[#allocation2] sm:$0xff]
        %v407 = vpack.c.bf16 %v405, %v405
        %v408 = vld [vmem:[#allocation8] sm:$0xf]
        %v409 = vld [vmem:[#allocation8 + $0x4] sm:$0xf]
        %v410 = vld [vmem:[#allocation8 + $0x8] sm:$0xf]
        %v411 = vld [vmem:[#allocation8 + $0xc] sm:$0xf]
        %v412 = vld [vmem:[#allocation8 + $0x10] sm:$0xf]
        %v413 = vld [vmem:[#allocation8 + $0x14] sm:$0xf]
        %v414 = vld [vmem:[#allocation8 + $0x18] sm:$0xf]
        %v415 = vld [vmem:[#allocation8 + $0x1c] sm:$0xf]
        %v416 = vld [vmem:[#allocation8 + $0x20] sm:$0xf]
        %v417 = vld [vmem:[#allocation8 + $0x24] sm:$0xf]
        %v418 = vld [vmem:[#allocation8 + $0x28] sm:$0xf]
        %v419 = vld [vmem:[#allocation8 + $0x2c] sm:$0xf]
        %v420 = vld [vmem:[#allocation8 + $0x30] sm:$0xf]
        %v421 = vld [vmem:[#allocation8 + $0x34] sm:$0xf]
        %v422 = vld [vmem:[#allocation8 + $0x38] sm:$0xf]
        %v423 = vld [vmem:[#allocation8 + $0x3c] sm:$0xf]
        %v440 = vunpack.c.l.b16 %v408
        %v441 = vunpack.c.l.b16 %v409
        %v442 = vunpack.c.l.b16 %v410
        %v443 = vunpack.c.l.b16 %v411
        %v444 = vunpack.c.l.b16 %v412
        %v445 = vunpack.c.l.b16 %v413
        %v446 = vunpack.c.l.b16 %v414
        %v447 = vunpack.c.l.b16 %v415
        %v448 = vunpack.c.l.b16 %v416
        %v449 = vunpack.c.l.b16 %v417
        %v450 = vunpack.c.l.b16 %v418
        %v451 = vunpack.c.l.b16 %v419
        %v452 = vunpack.c.l.b16 %v420
        %v453 = vunpack.c.l.b16 %v421
        %v454 = vunpack.c.l.b16 %v422
        %v455 = vunpack.c.l.b16 %v423
        %v456 = vpack.c.b16 %v441, %v440
        %v457 = vpack.c.b16 %v443, %v442
        %v458 = vpack.c.b16 %v445, %v444
        %v459 = vpack.c.b16 %v447, %v446
        %v460 = vpack.c.b16 %v449, %v448
        %v461 = vpack.c.b16 %v451, %v450
        %v462 = vpack.c.b16 %v453, %v452
        %v463 = vpack.c.b16 %v455, %v454
        %472 = vmatpush.bf16.msra.mxu0 %v463
        %473 = vmatpush.bf16.msra.mxu0 %v462
        %474 = vmatpush.bf16.msra.mxu0 %v461
        %475 = vmatpush.bf16.msra.mxu0 %v460
        %476 = vmatpush.bf16.msra.mxu0 %v459
        %477 = vmatpush.bf16.msra.mxu0 %v458
        %478 = vmatpush.bf16.msra.mxu0 %v457
        %479 = vmatpush.bf16.msra.mxu0 %v456
        %480 = vmatmul.bf16.gmra.mxu0 %v407
        %v481 = vpop.f32.mrf.mxu0
        %v482 = vadd.f32 0.0, %v481
        %v483 = vpop.f32.mrf.mxu0
        %484 = vdwg.mxu0
        %v485 = vadd.f32 %v406, %v482
        %486 = vst [vmem:[#allocation2] sm:$0xff] %v485
        // Predicated region
        $region57: #{tpu_custom_call.1} parent=39 // pred_check
          %p487 = pneg %p317
        $region58: #{tpu_custom_call.1} parent=39 // pred_check_branch
          %489 = sbr.rel (%p487) target = $region60
        $region59: #{tpu_custom_call.1} parent=39 // pred_region
          %v490 = vld [vmem:[#allocation2] sm:$0xff]
          %v491 = vld [vmem:[%s4] sm:$0x1]
          %v493 = vperm.slane %v491, 0
          %v495 = vadd.f32 %v490, %v493
          %496 = vst [vmem:[%s312] sm:$0xff] %v495
        $region60: #{tpu_custom_call.1} parent=39 // pred_fallthru
          _
        %s497 = sand.u32 %s168, 1
        %s498 = scalar_lea.sflag [#allocation5], %s497
        %s499 = sand.u32 %s168, 1
        %s500 = smul.addr %s499, 8
        %s501 = scalar_lea.vmem [#allocation9], %s500
        // Predicated region
        $region61: #{tpu_custom_call.1} parent=39 // pred_check
          %p502 = pneg %p178
        $region62: #{tpu_custom_call.1} parent=39 // pred_check_branch
          %504 = sbr.rel (%p502) target = $region64
        $region63: #{tpu_custom_call.1} parent=39 // pred_region
          %506 = vsyncadd %s498, 0
          %s507 = smul.addr %s27, 8
          %s508 = scalar_lea.hbm %s5, %s507
          %s510 = sshll.u32 %s501, 4
          %s511 = int_to_ptr.vmem [resolvable:$true] %s510
          %s512 = sshll.u32 %s508, 4
          %s513 = int_to_ptr.hbm [resolvable:$true] %s512
          %515 = dma.vmem_to_hbm [thread:$0]  %s511, 128, %s513, %s498
        $region64: #{tpu_custom_call.1} parent=39 // pred_fallthru
          _
      $region40: #{tpu_custom_call.1} parent=5 // pred_fallthru
        _
      %p516 = scmp.le.s32.totalorder 2, %s18
      // Predicated region
      $region65: #{tpu_custom_call.1} parent=5 // pred_check
        %p517 = pneg %p516
      $region66: #{tpu_custom_call.1} parent=5 // pred_check_branch
        %519 = sbr.rel (%p517) target = $region68
      $region67: #{tpu_custom_call.1} parent=5 // pred_region
        %s520 = ssub.s32 %s18, 2
        // Predicated region
        $region69: #{tpu_custom_call.1} parent=67 // pred_check
          %p521 = pneg %p184
        $region70: #{tpu_custom_call.1} parent=67 // pred_check_branch
          %523 = sbr.rel (%p521) target = $region72
        $region71: #{tpu_custom_call.1} parent=67 // pred_region
          %s524 = sand.u32 %s169, 1
          %s525 = scalar_lea.sflag [#allocation5], %s524
          %s526 = sand.u32 %s169, 1
          %s527 = smul.addr %s526, 8
          %s528 = scalar_lea.vmem [#allocation9], %s527
          %530 = dma.done %s525, 128
        $region72: #{tpu_custom_call.1} parent=67 // pred_fallthru
          _
      $region68: #{tpu_custom_call.1} parent=5 // pred_fallthru
        _
    $region6: #{tpu_custom_call.1} parent=1 // loop_footer
      %s22 = sadd.s32 1, %s18
    $region7: #{tpu_custom_call.1} parent=1 // loop_footer_branch
      %17 = sbr.rel target = $region3
    $region8: #{tpu_custom_call.1} parent=1 // loop_exit
      _
    %531 = vsyncpa [#allocation4], 1
    %s532 = scalar_lea.sflag [#allocation4], 1
    %533 = vsyncpa %s532, 1
    %534 = vsyncpa [#allocation7], 1
    %535 = vsyncpa [#allocation5], 1
    %s536 = scalar_lea.sflag [#allocation5], 1
    %537 = vsyncpa %s536, 1

// kernel: tpu_custom_call.1
$region0: #{tpu_custom_call.1}
  #allocation0 [shape = 'u32[]', space=smem, size = 0x4, offset = 0x4, fixed_abs, tag = 'smem constant byte address 0x4 - core index']
  #allocation1 [shape = 'u32[72,128]{1,0:T(1,128)}', space=vmem, size = 0x9000, scoped, tag = 'internal scratch']
  #allocation2 [shape = 'f32[8,128]{1,0:T(8,128)}', space=vmem, size = 0x1000, scoped, tag = 'scratch operand']
  %s0 = inlined_call_operand.hbm [shape: f32[16,128], index: 0, kind: input, shape index: {}]
  %s1 = inlined_call_operand.hbm [shape: bf16[128,128], index: 1, kind: input, shape index: {}]
  %s2 = inlined_call_operand.vmem [shape: f32[1,128], index: 2, kind: input, shape index: {}]
  %s3 = inlined_call_operand.hbm [shape: bf16[128,128], index: 3, kind: input, shape index: {}]
  %s4 = inlined_call_operand.vmem [shape: f32[1,128], index: 4, kind: input, shape index: {}]
  %s5 = inlined_call_operand.hbm [shape: f32[16,128], index: 5, kind: output, shape index: {}]
  %s6 = sld [smem:[#allocation0]]
  $region73: #{tpu_custom_call.1} parent=0
    _
  %s8 = ssub.s32 1, %s6
  %s9 = scalar_select 0, %s8, %s6
  $region1: #{tpu_custom_call.1} parent=0
    #allocation3 [shape = 'u8[8192]{0}', space=vmem, size = 0x2000, scoped, tag = 'input window, operand 0']
    #allocation4 [shape = 's32[2]{0}', space=sflag, size = 0x8, scoped, tag = 'scoped memory for tpu_custom_call.1']
    #allocation5 [shape = 's32[2]{0}', space=sflag, size = 0x8, scoped, tag = 'scoped memory for tpu_custom_call.1']
    #allocation6 [shape = 'u8[32768]{0}', space=vmem, size = 0x8000, scoped, tag = 'input window, operand 1, single buffered']
    #allocation7 [shape = 's32[1]{0}', space=sflag, size = 0x4, scoped, tag = 'scoped memory for tpu_custom_call.1']
    #allocation8 [shape = 'u8[32768]{0}', space=vmem, size = 0x8000, scoped, tag = 'input window, operand 3, single buffered']
    #allocation9 [shape = 'u8[8192]{0}', space=vmem, size = 0x2000, scoped, tag = 'output window, operand 0']
    %10 = vsyncpa [#allocation4], 0
    %s11 = scalar_lea.sflag [#allocation4], 1
    %12 = vsyncpa %s11, 0
    %13 = vsyncpa [#allocation7], 0
    %14 = vsyncpa [#allocation5], 0
    %s15 = scalar_lea.sflag [#allocation5], 1
    %16 = vsyncpa %s15, 0
    loop: start=0, step=1, limit=4
    $region2: #{tpu_custom_call.1} parent=1 // loop_pre_header
      _
    $region3: #{tpu_custom_call.1} parent=1 // loop_header
      %s18 = sphi 0, %s22
      %p19 = scmp.ge.s32.totalorder %s18, 4
      %s25 = sphi 0, %s37
      %s26 = sphi 0, %s33
      %s27 = sphi 0, %s25
      %s28 = sphi 0, %s26
      %s29 = sphi 0, %s27
      %s30 = sphi 0, %s28
      %s40 = sphi 0, %s42
      %s43 = sphi 0, %s40
      %s44 = sphi 0, %s43
      %s60 = sphi 0, %s44
      %s66 = sphi 0, %s68
      %s69 = sphi 0, %s66
      %s70 = sphi 0, %s69
      %s86 = sphi 0, %s70
      %s92 = sphi 0, %s94
      %s95 = sphi 0, %s92
      %s96 = sphi 0, %s95
      %s112 = sphi 0, %s96
      %s118 = sphi 0, %s120
      %s121 = sphi 0, %s118
      %s122 = sphi 0, %s121
      %s138 = sphi 0, %s122
      %s142 = sphi 0, %s142
      %s144 = sphi 0, %s142
      %s145 = sphi 0, %s144
      %s159 = sphi 0, %s145
      %s165 = sphi 0, %s167
      %s168 = sphi 0, %s165
      %s169 = sphi 0, %s168
      %s185 = sphi 0, %s169
    $region4: #{tpu_custom_call.1} parent=1 // loop_header_branch
      %21 = sbr.rel (%p19) target = $region8
    $region5: #{tpu_custom_call.1} parent=1 // loop_body
      %s23 = ssub.s32 %s18, 1
      %s24 = ssub.s32 %s18, 2
      %s31 = sadd.s32 1, %s26
      %p32 = scmp.ge.s32.totalorder %s31, 1
      %s33 = scalar_select %p32, 0, %s31
      %s34 = sadd.s32 1, %s25
      %s35 = scalar_select %p32, %s34, %s25
      %p36 = scmp.ge.s32.totalorder %s35, 2
      %s37 = scalar_select %p36, 0, %s35
      %s38 = ssub.s32 %s25, %s37
      %p39 = scmp.eq.s32.totalorder %s38, 0
      %s41 = sadd.s32 %s40, 1
      %s42 = scalar_select %p39, %s40, %s41
      %p45 = pneg %p39
      %p46 = scmp.eq.s32.totalorder %s18, 1
      %p47 = por %p45, %p46
      %p48 = scmp.ne.s32.totalorder %s40, %s43
      %p49 = scmp.eq.s32.totalorder %s18, 0
      %p50 = por %p48, %p49
      %p51 = scmp.ne.s32.totalorder %s40, %s43
      %p52 = scmp.eq.s32.totalorder %s23, 1
      %p53 = por %p51, %p52
      %p54 = scmp.ne.s32.totalorder %s43, %s44
      %p55 = scmp.eq.s32.totalorder %s23, 0
      %p56 = por %p54, %p55
      %p57 = scmp.ne.s32.totalorder %s43, %s44
      %p58 = scmp.eq.s32.totalorder %s24, 1
      %p59 = por %p57, %p58
      %p61 = scmp.ne.s32.totalorder %s44, %s60
      %p62 = scmp.eq.s32.totalorder %s24, 0
      %p63 = por %p61, %p62
      %s64 = ssub.s32 %s26, %s33
      %p65 = scmp.eq.s32.totalorder %s64, 0
      %s67 = sadd.s32 %s66, 1
      %s68 = scalar_select %p65, %s66, %s67
      %p71 = pneg %p65
      %p72 = scmp.eq.s32.totalorder %s18, 1
      %p73 = por %p71, %p72
      %p74 = scmp.ne.s32.totalorder %s66, %s69
      %p75 = scmp.eq.s32.totalorder %s18, 0
      %p76 = por %p74, %p75
      %p77 = scmp.ne.s32.totalorder %s66, %s69
      %p78 = scmp.eq.s32.totalorder %s23, 1
      %p79 = por %p77, %p78
      %p80 = scmp.ne.s32.totalorder %s69, %s70
      %p81 = scmp.eq.s32.totalorder %s23, 0
      %p82 = por %p80, %p81
      %p83 = scmp.ne.s32.totalorder %s69, %s70
      %p84 = scmp.eq.s32.totalorder %s24, 1
      %p85 = por %p83, %p84
      %p87 = scmp.ne.s32.totalorder %s70, %s86
      %p88 = scmp.eq.s32.totalorder %s24, 0
      %p89 = por %p87, %p88
      %s90 = ssub.s32 %s26, %s33
      %p91 = scmp.eq.s32.totalorder %s90, 0
      %s93 = sadd.s32 %s92, 1
      %s94 = scalar_select %p91, %s92, %s93
      %p97 = pneg %p91
      %p98 = scmp.eq.s32.totalorder %s18, 1
      %p99 = por %p97, %p98
      %p100 = scmp.ne.s32.totalorder %s92, %s95
      %p101 = scmp.eq.s32.totalorder %s18, 0
      %p102 = por %p100, %p101
      %p103 = scmp.ne.s32.totalorder %s92, %s95
      %p104 = scmp.eq.s32.totalorder %s23, 1
      %p105 = por %p103, %p104
      %p106 = scmp.ne.s32.totalorder %s95, %s96
      %p107 = scmp.eq.s32.totalorder %s23, 0
      %p108 = por %p106, %p107
      %p109 = scmp.ne.s32.totalorder %s95, %s96
      %p110 = scmp.eq.s32.totalorder %s24, 1
      %p111 = por %p109, %p110
      %p113 = scmp.ne.s32.totalorder %s96, %s112
      %p114 = scmp.eq.s32.totalorder %s24, 0
      %p115 = por %p113, %p114
      %s116 = ssub.s32 %s26, %s33
      %p117 = scmp.eq.s32.totalorder %s116, 0
      %s119 = sadd.s32 %s118, 1
      %s120 = scalar_select %p117, %s118, %s119
      %p123 = pneg %p117
      %p124 = scmp.eq.s32.totalorder %s18, 1
      %p125 = por %p123, %p124
      %p126 = scmp.ne.s32.totalorder %s118, %s121
      %p127 = scmp.eq.s32.totalorder %s18, 0
      %p128 = por %p126, %p127
      %p129 = scmp.ne.s32.totalorder %s118, %s121
      %p130 = scmp.eq.s32.totalorder %s23, 1
      %p131 = por %p129, %p130
      %p132 = scmp.ne.s32.totalorder %s121, %s122
      %p133 = scmp.eq.s32.totalorder %s23, 0
      %p134 = por %p132, %p133
      %p135 = scmp.ne.s32.totalorder %s121, %s122
      %p136 = scmp.eq.s32.totalorder %s24, 1
      %p137 = por %p135, %p136
      %p139 = scmp.ne.s32.totalorder %s122, %s138
      %p140 = scmp.eq.s32.totalorder %s24, 0
      %p141 = por %p139, %p140
      %s143 = sadd.s32 %s142, 1
      %p146 = scmp.eq.s32.totalorder %s18, 1
      %p147 = scmp.ne.s32.totalorder %s142, %s144
      %p148 = scmp.eq.s32.totalorder %s18, 0
      %p149 = por %p147, %p148
      %p150 = scmp.ne.s32.totalorder %s142, %s144
      %p151 = scmp.eq.s32.totalorder %s23, 1
      %p152 = por %p150, %p151
      %p153 = scmp.ne.s32.totalorder %s144, %s145
      %p154 = scmp.eq.s32.totalorder %s23, 0
      %p155 = por %p153, %p154
      %p156 = scmp.ne.s32.totalorder %s144, %s145
      %p157 = scmp.eq.s32.totalorder %s24, 1
      %p158 = por %p156, %p157
      %p160 = scmp.ne.s32.totalorder %s145, %s159
      %p161 = scmp.eq.s32.totalorder %s24, 0
      %p162 = por %p160, %p161
      %s163 = ssub.s32 %s25, %s37
      %p164 = scmp.eq.s32.totalorder %s163, 0
      %s166 = sadd.s32 %s165, 1
      %s167 = scalar_select %p164, %s165, %s166
      %p170 = pneg %p164
      %p171 = scmp.eq.s32.totalorder %s18, 1
      %p172 = por %p170, %p171
      %p173 = scmp.ne.s32.totalorder %s165, %s168
      %p174 = scmp.eq.s32.totalorder %s18, 0
      %p175 = por %p173, %p174
      %p176 = scmp.ne.s32.totalorder %s165, %s168
      %p177 = scmp.eq.s32.totalorder %s23, 1
      %p178 = por %p176, %p177
      %p179 = scmp.ne.s32.totalorder %s168, %s169
      %p180 = scmp.eq.s32.totalorder %s23, 0
      %p181 = por %p179, %p180
      %p182 = scmp.ne.s32.totalorder %s168, %s169
      %p183 = scmp.eq.s32.totalorder %s24, 1
      %p184 = por %p182, %p183
      %p186 = scmp.ne.s32.totalorder %s169, %s185
      %p187 = scmp.eq.s32.totalorder %s24, 0
      %p188 = por %p186, %p187
      %p189 = scmp.le.s32.totalorder 1, %s18
      %p190 = scmp.lt.s32.totalorder %s18, 3
      %p191 = pnand %p189, %p190
      %p192 = pneg %p191
      // Predicated region
      $region9: #{tpu_custom_call.1} parent=5 // pred_check
        _
      $region10: #{tpu_custom_call.1} parent=5 // pred_check_branch
        %194 = sbr.rel (%p191) target = $region12
      $region11: #{tpu_custom_call.1} parent=5 // pred_region
        %s195 = ssub.s32 %s18, 1
        // Predicated region
        $region13: #{tpu_custom_call.1} parent=11 // pred_check
          %p196 = pneg %p82
        $region14: #{tpu_custom_call.1} parent=11 // pred_check_branch
          %198 = sbr.rel (%p196) target = $region16
        $region15: #{tpu_custom_call.1} parent=11 // pred_region
          %200 = vsyncadd [#allocation7], 0
          %s201 = smul.addr %s28, 4
          %s202 = scalar_lea.hbm %s1, %s201
          %s203 = sshll.u32 %s202, 4
          %s204 = int_to_ptr.hbm [resolvable:$true] %s203
          %s205 = sshll.u32 [#allocation6], 4
          %s206 = int_to_ptr.vmem [resolvable:$true] %s205
          %211 = dma.hbm_to_vmem [thread:$0]  %s204, 1024, %s206, [#allocation7], 64, 64, 4
        $region16: #{tpu_custom_call.1} parent=11 // pred_fallthru
          _
        // Predicated region
        $region17: #{tpu_custom_call.1} parent=11 // pred_check
          %p212 = pneg %p108
        $region18: #{tpu_custom_call.1} parent=11 // pred_check_branch
          %214 = sbr.rel (%p212) target = $region20
        $region19: #{tpu_custom_call.1} parent=11 // pred_region
          %p215 = scmp.lt.s32.totalorder %s28, 0
          %s216 = scalar_select %p215, %s28, 0
          %s217 = scalar_lea.vmem %s2, %s216
        $region20: #{tpu_custom_call.1} parent=11 // pred_fallthru
          _
        // Predicated region
        $region21: #{tpu_custom_call.1} parent=11 // pred_check
          %p218 = pneg %p134
        $region22: #{tpu_custom_call.1} parent=11 // pred_check_branch
          %220 = sbr.rel (%p218) target = $region24
        $region23: #{tpu_custom_call.1} parent=11 // pred_region
          %s221 = smul.u32 16, %s28
          %223 = vsyncadd [#allocation7], 0
          %s224 = smul.addr %s221, 4
          %s225 = scalar_lea.hbm %s3, %s224
          %s226 = sshll.u32 %s225, 4
          %s227 = int_to_ptr.hbm [resolvable:$true] %s226
          %s228 = sshll.u32 [#allocation8], 4
          %s229 = int_to_ptr.vmem [resolvable:$true] %s228
          %234 = dma.hbm_to_vmem [thread:$0]  %s227, 1024, %s229, [#allocation7], 64, 64, 4
        $region24: #{tpu_custom_call.1} parent=11 // pred_fallthru
          _
        // Predicated region
        $region25: #{tpu_custom_call.1} parent=11 // pred_check
          %p235 = pneg %p155
        $region26: #{tpu_custom_call.1} parent=11 // pred_check_branch
          %237 = sbr.rel (%p235) target = $region28
        $region27: #{tpu_custom_call.1} parent=11 // pred_region
          _
        $region28: #{tpu_custom_call.1} parent=11 // pred_fallthru
          _
      $region12: #{tpu_custom_call.1} parent=5 // pred_fallthru
        _
      %p238 = scmp.lt.s32.totalorder %s18, 2
      // Predicated region
      $region29: #{tpu_custom_call.1} parent=5 // pred_check
        %p239 = pneg %p238
      $region30: #{tpu_custom_call.1} parent=5 // pred_check_branch
        %241 = sbr.rel (%p239) target = $region32
      $region31: #{tpu_custom_call.1} parent=5 // pred_region
        // Predicated region
        $region33: #{tpu_custom_call.1} parent=31 // pred_check
          %p242 = pneg %p50
        $region34: #{tpu_custom_call.1} parent=31 // pred_check_branch
          %244 = sbr.rel (%p242) target = $region36
        $region35: #{tpu_custom_call.1} parent=31 // pred_region
          %s245 = sand.u32 %s40, 1
          %s246 = scalar_lea.sflag [#allocation4], %s245
          %s247 = sand.u32 %s40, 1
          %s248 = smul.addr %s247, 8
          %s249 = scalar_lea.vmem [#allocation3], %s248
          %251 = vsyncadd %s246, 0
          %s252 = smul.addr %s25, 8
          %s253 = scalar_lea.hbm %s0, %s252
          %s255 = sshll.u32 %s253, 4
          %s256 = int_to_ptr.hbm [resolvable:$true] %s255
          %s257 = sshll.u32 %s249, 4
          %s258 = int_to_ptr.vmem [resolvable:$true] %s257
          %260 = dma.hbm_to_vmem [thread:$0]  %s256, 128, %s258, %s246
        $region36: #{tpu_custom_call.1} parent=31 // pred_fallthru
          _
      $region32: #{tpu_custom_call.1} parent=5 // pred_fallthru
        _
      %p261 = scmp.le.s32.totalorder 1, %s18
      %p262 = scmp.lt.s32.totalorder %s18, 3
      %p263 = pnand %p261, %p262
      %p264 = pneg %p263
      // Predicated region
      $region37: #{tpu_custom_call.1} parent=5 // pred_check
        _
      $region38: #{tpu_custom_call.1} parent=5 // pred_check_branch
        %266 = sbr.rel (%p263) target = $region40
      $region39: #{tpu_custom_call.1} parent=5 // pred_region
        %s267 = ssub.s32 %s18, 1
        %s268 = sand.u32 %s43, 1
        %s269 = scalar_lea.sflag [#allocation4], %s268
        %s270 = sand.u32 %s43, 1
        %s271 = smul.addr %s270, 8
        %s272 = scalar_lea.vmem [#allocation3], %s271
        // Predicated region
        $region41: #{tpu_custom_call.1} parent=39 // pred_check
          %p273 = pneg %p56
        $region42: #{tpu_custom_call.1} parent=39 // pred_check_branch
          %275 = sbr.rel (%p273) target = $region44
        $region43: #{tpu_custom_call.1} parent=39 // pred_region
          %277 = dma.done %s269, 128
        $region44: #{tpu_custom_call.1} parent=39 // pred_fallthru
          _
        // Predicated region
        $region45: #{tpu_custom_call.1} parent=39 // pred_check
          %p278 = pneg %p82
        $region46: #{tpu_custom_call.1} parent=39 // pred_check_branch
          %280 = sbr.rel (%p278) target = $region48
        $region47: #{tpu_custom_call.1} parent=39 // pred_region
          %282 = dma.done [#allocation7], 1024
        $region48: #{tpu_custom_call.1} parent=39 // pred_fallthru
          _
        // Predicated region
        $region49: #{tpu_custom_call.1} parent=39 // pred_check
          %p283 = pneg %p134
        $region50: #{tpu_custom_call.1} parent=39 // pred_check_branch
          %285 = sbr.rel (%p283) target = $region52
        $region51: #{tpu_custom_call.1} parent=39 // pred_region
          %287 = dma.done [#allocation7], 1024
        $region52: #{tpu_custom_call.1} parent=39 // pred_fallthru
          _
        %s288 = sand.u32 %s43, 1
        %s289 = scalar_lea.sflag [#allocation4], %s288
        %s290 = sand.u32 %s43, 1
        %s291 = smul.addr %s290, 8
        %s292 = scalar_lea.vmem [#allocation3], %s291
        %p293 = pneg %p56
        %p294 = pneg %p53
        %p295 = pneg %p82
        %p296 = pneg %p79
        %p297 = scmp.lt.s32.totalorder %s28, 0
        %s298 = scalar_select %p297, %s28, 0
        %s299 = scalar_lea.vmem %s2, %s298
        %p300 = pneg %p108
        %p301 = pneg %p105
        %p302 = pneg %p134
        %p303 = pneg %p131
        %p304 = pneg %p155
        %p305 = pneg %p152
        %p306 = pneg %p181
        %p307 = pneg %p178
        %s308 = sand.u32 %s168, 1
        %s309 = scalar_lea.sflag [#allocation5], %s308
        %s310 = sand.u32 %s168, 1
        %s311 = smul.addr %s310, 8
        %s312 = scalar_lea.vmem [#allocation9], %s311
        %p313 = scmp.lt.s32.totalorder %s28, 0
        %s314 = scalar_select %p313, %s28, 0
        %s315 = scalar_lea.vmem %s2, %s314
        %s316 = smul.u32 16, %s28
        %p317 = scmp.eq.s32.totalorder %s28, 0
        // Predicated region
        $region53: #{tpu_custom_call.1} parent=39 // pred_check
          %p318 = pneg %p317
        $region54: #{tpu_custom_call.1} parent=39 // pred_check_branch
          %320 = sbr.rel (%p318) target = $region56
        $region55: #{tpu_custom_call.1} parent=39 // pred_region
          %321 = vst [vmem:[#allocation2] sm:$0xff] 0.0
        $region56: #{tpu_custom_call.1} parent=39 // pred_fallthru
          _
        %v322 = vld [vmem:[%s272] sm:$0xff]
        %v323 = vpack.c.bf16 %v322, %v322
        %v324 = vld [vmem:[#allocation6] sm:$0xf]
        %v325 = vld [vmem:[#allocation6 + $0x4] sm:$0xf]
        %v326 = vld [vmem:[#allocation6 + $0x8] sm:$0xf]
        %v327 = vld [vmem:[#allocation6 + $0xc] sm:$0xf]
        %v328 = vld [vmem:[#allocation6 + $0x10] sm:$0xf]
        %v329 = vld [vmem:[#allocation6 + $0x14] sm:$0xf]
        %v330 = vld [vmem:[#allocation6 + $0x18] sm:$0xf]
        %v331 = vld [vmem:[#allocation6 + $0x1c] sm:$0xf]
        %v332 = vld [vmem:[#allocation6 + $0x20] sm:$0xf]
        %v333 = vld [vmem:[#allocation6 + $0x24] sm:$0xf]
        %v334 = vld [vmem:[#allocation6 + $0x28] sm:$0xf]
        %v335 = vld [vmem:[#allocation6 + $0x2c] sm:$0xf]
        %v336 = vld [vmem:[#allocation6 + $0x30] sm:$0xf]
        %v337 = vld [vmem:[#allocation6 + $0x34] sm:$0xf]
        %v338 = vld [vmem:[#allocation6 + $0x38] sm:$0xf]
        %v339 = vld [vmem:[#allocation6 + $0x3c] sm:$0xf]
        %v340 = vld [vmem:[%s315] sm:$0x1]
        %v342 = vperm.slane %v340, 0
        %v360 = vunpack.c.l.b16 %v324
        %v361 = vunpack.c.l.b16 %v325
        %v362 = vunpack.c.l.b16 %v326
        %v363 = vunpack.c.l.b16 %v327
        %v364 = vunpack.c.l.b16 %v328
        %v365 = vunpack.c.l.b16 %v329
        %v366 = vunpack.c.l.b16 %v330
        %v367 = vunpack.c.l.b16 %v331
        %v368 = vunpack.c.l.b16 %v332
        %v369 = vunpack.c.l.b16 %v333
        %v370 = vunpack.c.l.b16 %v334
        %v371 = vunpack.c.l.b16 %v335
        %v372 = vunpack.c.l.b16 %v336
        %v373 = vunpack.c.l.b16 %v337
        %v374 = vunpack.c.l.b16 %v338
        %v375 = vunpack.c.l.b16 %v339
        %v376 = vpack.c.b16 %v361, %v360
        %v377 = vpack.c.b16 %v363, %v362
        %v378 = vpack.c.b16 %v365, %v364
        %v379 = vpack.c.b16 %v367, %v366
        %v380 = vpack.c.b16 %v369, %v368
        %v381 = vpack.c.b16 %v371, %v370
        %v382 = vpack.c.b16 %v373, %v372
        %v383 = vpack.c.b16 %v375, %v374
        %392 = vmatpush.bf16.msra.mxu0 %v383
        %393 = vmatpush.bf16.msra.mxu0 %v382
        %394 = vmatpush.bf16.msra.mxu0 %v381
        %395 = vmatpush.bf16.msra.mxu0 %v380
        %396 = vmatpush.bf16.msra.mxu0 %v379
        %397 = vmatpush.bf16.msra.mxu0 %v378
        %398 = vmatpush.bf16.msra.mxu0 %v377
        %399 = vmatpush.bf16.msra.mxu0 %v376
        %400 = vmatmul.bf16.gmra.mxu0 %v323
        %v401 = vpop.f32.mrf.mxu0
        %v402 = vadd.f32 %v342, %v401
        %v403 = vpop.f32.mrf.mxu0
        %404 = vdwg.mxu0
        %v405 = vmax.f32 %v402, 0.0
        %v406 = vld [vmem:[#allocation2] sm:$0xff]
        %v407 = vpack.c.bf16 %v405, %v405
        %v408 = vld [vmem:[#allocation8] sm:$0xf]
        %v409 = vld [vmem:[#allocation8 + $0x4] sm:$0xf]
        %v410 = vld [vmem:[#allocation8 + $0x8] sm:$0xf]
        %v411 = vld [vmem:[#allocation8 + $0xc] sm:$0xf]
        %v412 = vld [vmem:[#allocation8 + $0x10] sm:$0xf]
        %v413 = vld [vmem:[#allocation8 + $0x14] sm:$0xf]
        %v414 = vld [vmem:[#allocation8 + $0x18] sm:$0xf]
        %v415 = vld [vmem:[#allocation8 + $0x1c] sm:$0xf]
        %v416 = vld [vmem:[#allocation8 + $0x20] sm:$0xf]
        %v417 = vld [vmem:[#allocation8 + $0x24] sm:$0xf]
        %v418 = vld [vmem:[#allocation8 + $0x28] sm:$0xf]
        %v419 = vld [vmem:[#allocation8 + $0x2c] sm:$0xf]
        %v420 = vld [vmem:[#allocation8 + $0x30] sm:$0xf]
        %v421 = vld [vmem:[#allocation8 + $0x34] sm:$0xf]
        %v422 = vld [vmem:[#allocation8 + $0x38] sm:$0xf]
        %v423 = vld [vmem:[#allocation8 + $0x3c] sm:$0xf]
        %v440 = vunpack.c.l.b16 %v408
        %v441 = vunpack.c.l.b16 %v409
        %v442 = vunpack.c.l.b16 %v410
        %v443 = vunpack.c.l.b16 %v411
        %v444 = vunpack.c.l.b16 %v412
        %v445 = vunpack.c.l.b16 %v413
        %v446 = vunpack.c.l.b16 %v414
        %v447 = vunpack.c.l.b16 %v415
        %v448 = vunpack.c.l.b16 %v416
        %v449 = vunpack.c.l.b16 %v417
        %v450 = vunpack.c.l.b16 %v418
        %v451 = vunpack.c.l.b16 %v419
        %v452 = vunpack.c.l.b16 %v420
        %v453 = vunpack.c.l.b16 %v421
        %v454 = vunpack.c.l.b16 %v422
        %v455 = vunpack.c.l.b16 %v423
        %v456 = vpack.c.b16 %v441, %v440
        %v457 = vpack.c.b16 %v443, %v442
        %v458 = vpack.c.b16 %v445, %v444
        %v459 = vpack.c.b16 %v447, %v446
        %v460 = vpack.c.b16 %v449, %v448
        %v461 = vpack.c.b16 %v451, %v450
        %v462 = vpack.c.b16 %v453, %v452
        %v463 = vpack.c.b16 %v455, %v454
        %472 = vmatpush.bf16.msra.mxu0 %v463
        %473 = vmatpush.bf16.msra.mxu0 %v462
        %474 = vmatpush.bf16.msra.mxu0 %v461
        %475 = vmatpush.bf16.msra.mxu0 %v460
        %476 = vmatpush.bf16.msra.mxu0 %v459
        %477 = vmatpush.bf16.msra.mxu0 %v458
        %478 = vmatpush.bf16.msra.mxu0 %v457
        %479 = vmatpush.bf16.msra.mxu0 %v456
        %480 = vmatmul.bf16.gmra.mxu0 %v407
        %v481 = vpop.f32.mrf.mxu0
        %v482 = vadd.f32 0.0, %v481
        %v483 = vpop.f32.mrf.mxu0
        %484 = vdwg.mxu0
        %v485 = vadd.f32 %v406, %v482
        %486 = vst [vmem:[#allocation2] sm:$0xff] %v485
        // Predicated region
        $region57: #{tpu_custom_call.1} parent=39 // pred_check
          %p487 = pneg %p317
        $region58: #{tpu_custom_call.1} parent=39 // pred_check_branch
          %489 = sbr.rel (%p487) target = $region60
        $region59: #{tpu_custom_call.1} parent=39 // pred_region
          %v490 = vld [vmem:[#allocation2] sm:$0xff]
          %v491 = vld [vmem:[%s4] sm:$0x1]
          %v493 = vperm.slane %v491, 0
          %v495 = vadd.f32 %v490, %v493
          %496 = vst [vmem:[%s312] sm:$0xff] %v495
        $region60: #{tpu_custom_call.1} parent=39 // pred_fallthru
          _
        %s497 = sand.u32 %s168, 1
        %s498 = scalar_lea.sflag [#allocation5], %s497
        %s499 = sand.u32 %s168, 1
        %s500 = smul.addr %s499, 8
        %s501 = scalar_lea.vmem [#allocation9], %s500
        // Predicated region
        $region61: #{tpu_custom_call.1} parent=39 // pred_check
          %p502 = pneg %p178
        $region62: #{tpu_custom_call.1} parent=39 // pred_check_branch
          %504 = sbr.rel (%p502) target = $region64
        $region63: #{tpu_custom_call.1} parent=39 // pred_region
          %506 = vsyncadd %s498, 0
          %s507 = smul.addr %s27, 8
          %s508 = scalar_lea.hbm %s5, %s507
          %s510 = sshll.u32 %s501, 4
          %s511 = int_to_ptr.vmem [resolvable:$true] %s510
          %s512 = sshll.u32 %s508, 4
          %s513 = int_to_ptr.hbm [resolvable:$true] %s512
          %515 = dma.vmem_to_hbm [thread:$0]  %s511, 128, %s513, %s498
        $region64: #{tpu_custom_call.1} parent=39 // pred_fallthru
          _
      $region40: #{tpu_custom_call.1} parent=5 // pred_fallthru
        _
      %p516 = scmp.le.s32.totalorder 2, %s18
      // Predicated region
      $region65: #{tpu_custom_call.1} parent=5 // pred_check
        %p517 = pneg %p516
      $region66: #{tpu_custom_call.1} parent=5 // pred_check_branch
        %519 = sbr.rel (%p517) target = $region68
      $region67: #{tpu_custom_call.1} parent=5 // pred_region
        %s520 = ssub.s32 %s18, 2
        // Predicated region
        $region69: #{tpu_custom_call.1} parent=67 // pred_check
          %p521 = pneg %p184
        $region70: #{tpu_custom_call.1} parent=67 // pred_check_branch
          %523 = sbr.rel (%p521) target = $region72
        $region71: #{tpu_custom_call.1} parent=67 // pred_region
          %s524 = sand.u32 %s169, 1
          %s525 = scalar_lea.sflag [#allocation5], %s524
          %s526 = sand.u32 %s169, 1
          %s527 = smul.addr %s526, 8
          %s528 = scalar_lea.vmem [#allocation9], %s527
          %530 = dma.done %s525, 128
        $region72: #{tpu_custom_call.1} parent=67 // pred_fallthru
          _
      $region68: #{tpu_custom_call.1} parent=5 // pred_fallthru
        _
    $region6: #{tpu_custom_call.1} parent=1 // loop_footer
      %s22 = sadd.s32 1, %s18
    $region7: #{tpu_custom_call.1} parent=1 // loop_footer_branch
      %17 = sbr.rel target = $region3
    $region8: #{tpu_custom_call.1} parent=1 // loop_exit
      _
    %531 = vsyncpa [#allocation4], 1
    %s532 = scalar_lea.sflag [#allocation4], 1
    %533 = vsyncpa %s532, 1
    %534 = vsyncpa [#allocation7], 1
    %535 = vsyncpa [#allocation5], 1
    %s536 = scalar_lea.sflag [#allocation5], 1
    %537 = vsyncpa %s536, 1

</llo_original>
